<compile_context>
chip_gen: v5e
topology: v5e:2x2
jax: 0.10.0
libtpu: 0.0.40
codegen_flags: <defaults>
</compile_context>

<pallas_src>
import functools

import jax
import jax.numpy as jnp
from jax.experimental import pallas as pl
from jax.experimental.pallas import tpu as pltpu


def _round_up(a, b):
    return (a + b - 1) // b * b


# ----------------------------------------------------------------------------
# Fused Pallas kernel: conv1 -> ReLU -> (mask) -> conv2 -> ReLU -> 1x1 head
# ----------------------------------------------------------------------------
def _featlayer_fused_kernel(x_ref, w1_ref, b1_ref, w2_ref, b2_ref,
                            wo_ref, bo_ref, y_ref, y1_ref,
                            *, k, h, w, wr, s, s_out):
    # x_ref  : (Cin_p, S)            flattened zero-padded image (row stride wr)
    # w1_ref : (Cmid_p, k*k*Cin_p)   tap-stacked conv1 weights (f32)
    # w2_ref : (Cmid_p, k*k*Cmid_p)  tap-stacked conv2 weights (bf16)
    # b1_ref, b2_ref : (Cmid_p, 1) ; wo_ref : (Cmid_p, 1) ; bo_ref : (1, 1)
    # y_ref  : (Cmid_p, S_out), y1_ref : (1, S_out)   lane-dense output slabs
    p = k // 2
    taps = [dy * wr + dx for dy in range(-p, p + 1) for dx in range(-p, p + 1)]

    def shift_lanes(a, amt):
        # a_shifted[..., i] = a[..., i + amt]  (static XLU lane rotation; the
        # wrapped-around lanes are never read for valid output positions).
        if amt % s == 0:
            return a
        return pltpu.roll(a, (-amt) % s, axis=1)

    x = x_ref[...]                                      # (Cin_p, S) f32 in VMEM

    # ---- conv1: ONE MXU matmul, K = k*k*Cin_p (tap-stacked in-VMEM im2col) --
    stack1 = jnp.concatenate([shift_lanes(x, t) for t in taps], axis=0)
    acc1 = jnp.dot(w1_ref[...], stack1, preferred_element_type=jnp.float32)
    h1 = jnp.maximum(acc1 + b1_ref[...], 0.0)           # bias + ReLU (f32)

    # ---- interior mask from a lane iota (no DMA'd mask input) --------------
    # row = floor((i + .5) / wr), col = i - row*wr  -- float trick avoids
    # vector integer div/mod; exact for these index magnitudes.
    lane = jax.lax.broadcasted_iota(jnp.int32, (1, s), 1).astype(jnp.float32)
    row = jnp.floor((lane + 0.5) * (1.0 / wr))
    col = lane - row * wr
    interior = ((row >= 2 * p) & (row < 2 * p + h) &
                (col >= 2 * p) & (col < 2 * p + w))
    h1 = jnp.where(interior, h1, 0.0)                   # == conv2's zero pad

    # ---- conv2: ONE bf16 MXU matmul, K = k*k*Cmid_p -------------------------
    stack2 = jnp.concatenate([shift_lanes(h1, t) for t in taps],
                             axis=0).astype(jnp.bfloat16)
    acc2 = jnp.dot(w2_ref[...], stack2, preferred_element_type=jnp.float32)
    y = jnp.maximum(acc2 + b2_ref[...], 0.0)            # (Cmid_p, S) f32
    # Dropout in eval/inference mode is the identity.

    # ---- fused 1x1 head: VPU multiply + cross-sublane reduction -------------
    y1 = jnp.sum(y * wo_ref[...], axis=0, keepdims=True) + bo_ref[...]

    # ---- lane-dense stores: shift so lane m == flat output index i*wr + j ---
    base = 2 * p * wr + 2 * p
    y_ref[...] = shift_lanes(y, base)[:, :s_out].astype(y_ref.dtype)
    y1_ref[...] = shift_lanes(y1, base)[:, :s_out].astype(y1_ref.dtype)


# ----------------------------------------------------------------------------
# One-time parameter prep (hoisted out of the forward pass)
# ----------------------------------------------------------------------------
def prepare_params(params, k):
    assert k % 2 == 1, "only odd kernel sizes give 'same' padding with k//2"
    cmid, cin = params["w1"].shape[0], params["w1"].shape[1]
    cin_p = _round_up(cin, 8)      # align tap blocks to the 8-row f32 tile
    cmid_p = _round_up(cmid, 8)

    # (Cout, Cin, kh, kw) -> (Cout, kh, kw, Cin) -> pad -> (Cout_p, k*k*Cin_p)
    w1t = jnp.transpose(params["w1"], (0, 2, 3, 1))
    w1t = jnp.pad(w1t, ((0, cmid_p - cmid), (0, 0), (0, 0), (0, cin_p - cin)))
    w1t = w1t.reshape(cmid_p, k * k * cin_p).astype(jnp.float32)

    w2t = jnp.transpose(params["w2"], (0, 2, 3, 1))
    w2t = jnp.pad(w2t, ((0, cmid_p - cmid), (0, 0), (0, 0), (0, cmid_p - cmid)))
    w2t = w2t.reshape(cmid_p, k * k * cmid_p).astype(jnp.bfloat16)  # bf16 MXU

    b1 = jnp.pad(params["b1"], (0, cmid_p - cmid)).reshape(cmid_p, 1)
    b2 = jnp.pad(params["b2"], (0, cmid_p - cmid)).reshape(cmid_p, 1)
    wo = jnp.pad(params["wo"].reshape(1, cmid),
                 ((0, 0), (0, cmid_p - cmid))).T                    # (Cmid_p,1)
    return {
        "w1t": w1t,
        "b1": b1.astype(jnp.float32),
        "w2t": w2t,
        "b2": b2.astype(jnp.float32),
        "wo": wo.astype(jnp.float32),
        "bo": params["bo"].reshape(1, 1).astype(jnp.float32),
    }


# ----------------------------------------------------------------------------
# Forward pass (single pallas_call)
# ----------------------------------------------------------------------------
def featlayer_last_forward(x_nchw, prep, *, k, channel):
    p = k // 2
    n, cin, h, w = x_nchw.shape
    cmid_p = prep["b1"].shape[0]
    cin_p = prep["w1t"].shape[1] // (k * k)

    wr = w + 4 * p                    # padded row stride in the flat layout
    hq = h + 4 * p
    s_raw = hq * wr
    s = _round_up(s_raw, 128)         # lane-dense input slab length
    s_out = _round_up(h * wr, 128)    # lane-dense output slab length

    # One small pad of the Cin-channel input (channels -> Cin_p, 2p per spatial
    # side), flatten spatial, pad the flat axis to a multiple of 128 lanes.
    xp = jnp.pad(x_nchw.astype(jnp.float32),
                 ((0, 0), (0, cin_p - cin), (2 * p, 2 * p), (2 * p, 2 * p)))
    xf = xp.reshape(n, cin_p, s_raw)
    if s > s_raw:
        xf = jnp.pad(xf, ((0, 0), (0, 0), (0, s - s_raw)))

    kern = functools.partial(_featlayer_fused_kernel,
                             k=k, h=h, w=w, wr=wr, s=s, s_out=s_out)

    grid_spec = pltpu.PrefetchScalarGridSpec(
        num_scalar_prefetch=0,
        grid=(n,),
        in_specs=[
            pl.BlockSpec((None, cin_p, s), lambda i: (i, 0, 0)),        # xf
            pl.BlockSpec((cmid_p, k * k * cin_p), lambda i: (0, 0)),    # w1t
            pl.BlockSpec((cmid_p, 1), lambda i: (0, 0)),                # b1
            pl.BlockSpec((cmid_p, k * k * cmid_p), lambda i: (0, 0)),   # w2t
            pl.BlockSpec((cmid_p, 1), lambda i: (0, 0)),                # b2
            pl.BlockSpec((cmid_p, 1), lambda i: (0, 0)),                # wo
            pl.BlockSpec((1, 1), lambda i: (0, 0)),                     # bo
        ],
        out_specs=[
            pl.BlockSpec((None, cmid_p, s_out), lambda i: (i, 0, 0)),   # y
            pl.BlockSpec((None, 1, s_out), lambda i: (i, 0, 0)),        # y1
        ],
    )

    flops = 2 * n * s * cmid_p * (k * k * cin_p + k * k * cmid_p + 1)
    bytes_accessed = int(
        xf.size * 4
        + n * (prep["w1t"].size * 4 + prep["w2t"].size * 2
               + prep["b1"].size * 4 + prep["b2"].size * 4
               + prep["wo"].size * 4 + prep["bo"].size * 4)
        + n * cmid_p * s_out * 4 + n * s_out * 4)

    y_flat, y1_flat = pl.pallas_call(
        kern,
        out_shape=(jax.ShapeDtypeStruct((n, cmid_p, s_out), jnp.float32),
                   jax.ShapeDtypeStruct((n, 1, s_out), jnp.float32)),
        grid_spec=grid_spec,
        compiler_params=pltpu.CompilerParams(
            dimension_semantics=("parallel",),
            vmem_limit_bytes=32 * 1024 * 1024),
        cost_estimate=pl.CostEstimate(flops=flops, transcendentals=0,
                                      bytes_accessed=bytes_accessed),
    )(xf, prep["w1t"], prep["b1"], prep["w2t"], prep["b2"],
      prep["wo"], prep["bo"])

    # Kernel lane m already equals flat output index i*wr + j, so the epilogue
    # is slice + reshape + crop only (no jnp.pad HBM round trips).
    hwr = h * wr
    y = y_flat[:, :, :hwr].reshape(n, cmid_p, h, wr)[:, :channel, :, :w]
    y1 = y1_flat[:, :, :hwr].reshape(n, 1, h, wr)[:, :, :, :w]
    return y, y1


# ----------------------------------------------------------------------------
# Param init (PyTorch-style uniform) and a pure-JAX reference for checking
# ----------------------------------------------------------------------------
def init_featlayer_last_params(key, in_channel, channel, k):
    k1, k2, k3, k4, k5, k6 = jax.random.split(key, 6)
    s1 = 1.0 / jnp.sqrt(in_channel * k * k)
    s2 = 1.0 / jnp.sqrt(channel * k * k)
    s3 = 1.0 / jnp.sqrt(channel * 1 * 1)
    return {
        "w1": jax.random.uniform(k1, (channel, in_channel, k, k), jnp.float32, -s1, s1),
        "b1": jax.random.uniform(k2, (channel,), jnp.float32, -s1, s1),
        "w2": jax.random.uniform(k3, (channel, channel, k, k), jnp.float32, -s2, s2),
        "b2": jax.random.uniform(k4, (channel,), jnp.float32, -s2, s2),
        "wo": jax.random.uniform(k5, (1, channel, 1, 1), jnp.float32, -s3, s3),
        "bo": jax.random.uniform(k6, (1,), jnp.float32, -s3, s3),
    }


def reference_forward(x, params, k):
    def conv(x, wgt, b, kk):
        p = kk // 2
        out = jax.lax.conv_general_dilated(
            x, wgt, window_strides=(1, 1), padding=((p, p), (p, p)),
            dimension_numbers=("NCHW", "OIHW", "NCHW"),
            precision=jax.lax.Precision.HIGHEST)
        return out + b.reshape(1, -1, 1, 1)
    y = jax.nn.relu(conv(x, params["w1"], params["b1"], k))
    y = jax.nn.relu(conv(y, params["w2"], params["b2"], k))
    y1 = conv(y, params["wo"], params["bo"], 1)
    return y, y1


if __name__ == "__main__":
    key = jax.random.PRNGKey(0)
    kx, kp = jax.random.split(key)

    batch, in_channel, channel, k, spatial = 2, 4, 8, 3, 16
    x = jax.random.normal(kx, (batch, in_channel, spatial, spatial), jnp.float32)
    params = init_featlayer_last_params(kp, in_channel, channel, k)

    prep = prepare_params(params, k)                       # hoisted, one-time
    fwd = jax.jit(functools.partial(featlayer_last_forward, k=k, channel=channel))

    y, y1 = fwd(x, prep)
    jax.block_until_ready((y, y1))

    assert y.shape == (batch, channel, spatial, spatial), y.shape
    assert y1.shape == (batch, 1, spatial, spatial), y1.shape
    assert bool(jnp.all(y >= 0.0))                         # ReLU output

    y_ref, y1_ref = reference_forward(x, params, k)
    assert bool(jnp.allclose(y, y_ref, atol=2e-2, rtol=2e-2)), \
        float(jnp.max(jnp.abs(y - y_ref)))
    assert bool(jnp.allclose(y1, y1_ref, atol=2e-2, rtol=2e-2)), \
        float(jnp.max(jnp.abs(y1 - y1_ref)))

    print("KERNEL_OK")
</pallas_src>

<mosaic_0001>
module attributes {stable_mosaic.version = 11 : i64} {
  func.func @_featlayer_fused_kernel(%arg0: i32, %arg1: memref<1x8x512xf32, #tpu.memory_space<vmem>>, %arg2: memref<8x72xf32, #tpu.memory_space<vmem>>, %arg3: memref<8x1xf32, #tpu.memory_space<vmem>>, %arg4: memref<8x72xbf16, #tpu.memory_space<vmem>>, %arg5: memref<8x1xf32, #tpu.memory_space<vmem>>, %arg6: memref<8x1xf32, #tpu.memory_space<vmem>>, %arg7: memref<1x1xf32, #tpu.memory_space<vmem>>, %arg8: memref<1x8x384xf32, #tpu.memory_space<vmem>>, %arg9: memref<1x1x384xf32, #tpu.memory_space<vmem>>) attributes {dimension_semantics = [#tpu.dimension_semantics<parallel>], iteration_bounds = array<i64: 2>, scalar_prefetch = 0 : i64, scratch_operands = 0 : i64, tpu.core_type = #tpu.core_type<tc>, window_params = [{transform_indices = @transform_0, window_bounds = array<i64: 1, 8, 512>}, {pipeline_mode = #tpu.pipeline_mode<synchronous>, transform_indices = @transform_1, window_bounds = array<i64: 8, 72>}, {pipeline_mode = #tpu.pipeline_mode<synchronous>, transform_indices = @transform_2, window_bounds = array<i64: 8, 1>}, {pipeline_mode = #tpu.pipeline_mode<synchronous>, transform_indices = @transform_3, window_bounds = array<i64: 8, 72>}, {pipeline_mode = #tpu.pipeline_mode<synchronous>, transform_indices = @transform_4, window_bounds = array<i64: 8, 1>}, {pipeline_mode = #tpu.pipeline_mode<synchronous>, transform_indices = @transform_5, window_bounds = array<i64: 8, 1>}, {pipeline_mode = #tpu.pipeline_mode<synchronous>, transform_indices = @transform_6, window_bounds = array<i64: 1, 1>}, {transform_indices = @transform_7, window_bounds = array<i64: 1, 8, 384>}, {transform_indices = @transform_8, window_bounds = array<i64: 1, 1, 384>}]} {
    %c0 = arith.constant 0 : index
    %c0_0 = arith.constant 0 : index
    %c0_1 = arith.constant 0 : index
    %0 = vector.load %arg1[%c0, %c0_0, %c0_1] : memref<1x8x512xf32, #tpu.memory_space<vmem>>, vector<1x8x512xf32>
    %1 = vector.shape_cast %0 : vector<1x8x512xf32> to vector<8x512xf32>
    %c21_i32 = arith.constant 21 : i32
    %2 = tpu.dynamic_rotate %1 by %c21_i32 dim 1 : vector<8x512xf32>, i32 -> vector<8x512xf32>
    %c20_i32 = arith.constant 20 : i32
    %3 = tpu.dynamic_rotate %1 by %c20_i32 dim 1 : vector<8x512xf32>, i32 -> vector<8x512xf32>
    %c19_i32 = arith.constant 19 : i32
    %4 = tpu.dynamic_rotate %1 by %c19_i32 dim 1 : vector<8x512xf32>, i32 -> vector<8x512xf32>
    %c1_i32 = arith.constant 1 : i32
    %5 = tpu.dynamic_rotate %1 by %c1_i32 dim 1 : vector<8x512xf32>, i32 -> vector<8x512xf32>
    %c511_i32 = arith.constant 511 : i32
    %6 = tpu.dynamic_rotate %1 by %c511_i32 dim 1 : vector<8x512xf32>, i32 -> vector<8x512xf32>
    %c493_i32 = arith.constant 493 : i32
    %7 = tpu.dynamic_rotate %1 by %c493_i32 dim 1 : vector<8x512xf32>, i32 -> vector<8x512xf32>
    %c492_i32 = arith.constant 492 : i32
    %8 = tpu.dynamic_rotate %1 by %c492_i32 dim 1 : vector<8x512xf32>, i32 -> vector<8x512xf32>
    %c491_i32 = arith.constant 491 : i32
    %9 = tpu.dynamic_rotate %1 by %c491_i32 dim 1 : vector<8x512xf32>, i32 -> vector<8x512xf32>
    %10 = tpu.concatenate %2, %3, %4, %5, %1, %6, %7, %8, %9 in 0 : vector<8x512xf32>, vector<8x512xf32>, vector<8x512xf32>, vector<8x512xf32>, vector<8x512xf32>, vector<8x512xf32>, vector<8x512xf32>, vector<8x512xf32>, vector<8x512xf32> -> vector<72x512xf32>
    %c0_2 = arith.constant 0 : index
    %c0_3 = arith.constant 0 : index
    %11 = vector.load %arg2[%c0_2, %c0_3] : memref<8x72xf32, #tpu.memory_space<vmem>>, vector<8x72xf32>
    %cst = arith.constant dense<0.000000e+00> : vector<8x512xf32>
    %12 = tpu.matmul %11, %10, %cst {dimension_numbers = #tpu.dot_dimension_numbers<[1], [0], [0], [1], [0, 0, 1, 1], [], []>} : vector<8x72xf32>, vector<72x512xf32>, vector<8x512xf32> -> vector<8x512xf32>
    %c0_4 = arith.constant 0 : index
    %c0_5 = arith.constant 0 : index
    %13 = vector.load %arg3[%c0_4, %c0_5] : memref<8x1xf32, #tpu.memory_space<vmem>>, vector<8x1xf32>
    %14 = vector.broadcast %13 : vector<8x1xf32> to vector<8x512xf32>
    %15 = arith.addf %12, %14 : vector<8x512xf32>
    %cst_6 = arith.constant 0.000000e+00 : f32
    %16 = vector.broadcast %cst_6 : f32 to vector<8x512xf32>
    %17 = arith.maximumf %15, %16 : vector<8x512xf32>
    %18 = tpu.iota {dimensions = array<i32: 1>} : vector<1x512xi32>
    %19 = arith.sitofp %18 : vector<1x512xi32> to vector<1x512xf32>
    %cst_7 = arith.constant 5.000000e-01 : f32
    %20 = vector.broadcast %cst_7 : f32 to vector<1x512xf32>
    %21 = arith.addf %19, %20 : vector<1x512xf32>
    %cst_8 = arith.constant 5.000000e-02 : f32
    %22 = vector.broadcast %cst_8 : f32 to vector<1x512xf32>
    %23 = arith.mulf %21, %22 : vector<1x512xf32>
    %24 = math.floor %23 : vector<1x512xf32>
    %cst_9 = arith.constant 2.000000e+01 : f32
    %25 = vector.broadcast %cst_9 : f32 to vector<1x512xf32>
    %26 = arith.mulf %24, %25 : vector<1x512xf32>
    %27 = arith.subf %19, %26 : vector<1x512xf32>
    %cst_10 = arith.constant 2.000000e+00 : f32
    %28 = vector.broadcast %cst_10 : f32 to vector<1x512xf32>
    %29 = arith.cmpf oge, %24, %28 : vector<1x512xf32>
    %cst_11 = arith.constant 1.800000e+01 : f32
    %30 = vector.broadcast %cst_11 : f32 to vector<1x512xf32>
    %31 = arith.cmpf olt, %24, %30 : vector<1x512xf32>
    %32 = arith.andi %29, %31 : vector<1x512xi1>
    %cst_12 = arith.constant 2.000000e+00 : f32
    %33 = vector.broadcast %cst_12 : f32 to vector<1x512xf32>
    %34 = arith.cmpf oge, %27, %33 : vector<1x512xf32>
    %35 = arith.andi %32, %34 : vector<1x512xi1>
    %cst_13 = arith.constant 1.800000e+01 : f32
    %36 = vector.broadcast %cst_13 : f32 to vector<1x512xf32>
    %37 = arith.cmpf olt, %27, %36 : vector<1x512xf32>
    %38 = arith.andi %35, %37 : vector<1x512xi1>
    %cst_14 = arith.constant 0.000000e+00 : f32
    %39 = vector.shape_cast %38 : vector<1x512xi1> to vector<1x512xi1>
    %40 = vector.broadcast %39 : vector<1x512xi1> to vector<8x512xi1>
    %41 = vector.broadcast %cst_14 : f32 to vector<8x512xf32>
    %42 = arith.select %40, %17, %41 : vector<8x512xi1>, vector<8x512xf32>
    %c21_i32_15 = arith.constant 21 : i32
    %43 = tpu.dynamic_rotate %42 by %c21_i32_15 dim 1 : vector<8x512xf32>, i32 -> vector<8x512xf32>
    %c20_i32_16 = arith.constant 20 : i32
    %44 = tpu.dynamic_rotate %42 by %c20_i32_16 dim 1 : vector<8x512xf32>, i32 -> vector<8x512xf32>
    %c19_i32_17 = arith.constant 19 : i32
    %45 = tpu.dynamic_rotate %42 by %c19_i32_17 dim 1 : vector<8x512xf32>, i32 -> vector<8x512xf32>
    %c1_i32_18 = arith.constant 1 : i32
    %46 = tpu.dynamic_rotate %42 by %c1_i32_18 dim 1 : vector<8x512xf32>, i32 -> vector<8x512xf32>
    %c511_i32_19 = arith.constant 511 : i32
    %47 = tpu.dynamic_rotate %42 by %c511_i32_19 dim 1 : vector<8x512xf32>, i32 -> vector<8x512xf32>
    %c493_i32_20 = arith.constant 493 : i32
    %48 = tpu.dynamic_rotate %42 by %c493_i32_20 dim 1 : vector<8x512xf32>, i32 -> vector<8x512xf32>
    %c492_i32_21 = arith.constant 492 : i32
    %49 = tpu.dynamic_rotate %42 by %c492_i32_21 dim 1 : vector<8x512xf32>, i32 -> vector<8x512xf32>
    %c491_i32_22 = arith.constant 491 : i32
    %50 = tpu.dynamic_rotate %42 by %c491_i32_22 dim 1 : vector<8x512xf32>, i32 -> vector<8x512xf32>
    %51 = tpu.concatenate %43, %44, %45, %46, %42, %47, %48, %49, %50 in 0 : vector<8x512xf32>, vector<8x512xf32>, vector<8x512xf32>, vector<8x512xf32>, vector<8x512xf32>, vector<8x512xf32>, vector<8x512xf32>, vector<8x512xf32>, vector<8x512xf32> -> vector<72x512xf32>
    %52 = arith.truncf %51 : vector<72x512xf32> to vector<72x512xbf16>
    %c0_23 = arith.constant 0 : index
    %c0_24 = arith.constant 0 : index
    %53 = vector.load %arg4[%c0_23, %c0_24] : memref<8x72xbf16, #tpu.memory_space<vmem>>, vector<8x72xbf16>
    %cst_25 = arith.constant dense<0.000000e+00> : vector<8x512xf32>
    %54 = tpu.matmul %53, %52, %cst_25 {dimension_numbers = #tpu.dot_dimension_numbers<[1], [0], [0], [1], [0, 0, 1, 1], [], []>} : vector<8x72xbf16>, vector<72x512xbf16>, vector<8x512xf32> -> vector<8x512xf32>
    %c0_26 = arith.constant 0 : index
    %c0_27 = arith.constant 0 : index
    %55 = vector.load %arg5[%c0_26, %c0_27] : memref<8x1xf32, #tpu.memory_space<vmem>>, vector<8x1xf32>
    %56 = vector.broadcast %55 : vector<8x1xf32> to vector<8x512xf32>
    %57 = arith.addf %54, %56 : vector<8x512xf32>
    %cst_28 = arith.constant 0.000000e+00 : f32
    %58 = vector.broadcast %cst_28 : f32 to vector<8x512xf32>
    %59 = arith.maximumf %57, %58 : vector<8x512xf32>
    %c0_29 = arith.constant 0 : index
    %c0_30 = arith.constant 0 : index
    %60 = vector.load %arg6[%c0_29, %c0_30] : memref<8x1xf32, #tpu.memory_space<vmem>>, vector<8x1xf32>
    %61 = vector.broadcast %60 : vector<8x1xf32> to vector<8x512xf32>
    %62 = arith.mulf %59, %61 : vector<8x512xf32>
    %cst_31 = arith.constant dense<0.000000e+00> : vector<512xf32>
    %63 = vector.multi_reduction <add>, %62, %cst_31 [0] : vector<8x512xf32> to vector<512xf32>
    %64 = vector.shape_cast %63 : vector<512xf32> to vector<1x512xf32>
    %c0_32 = arith.constant 0 : index
    %c0_33 = arith.constant 0 : index
    %65 = vector.load %arg7[%c0_32, %c0_33] : memref<1x1xf32, #tpu.memory_space<vmem>>, vector<1x1xf32>
    %66 = vector.broadcast %65 : vector<1x1xf32> to vector<1x512xf32>
    %67 = arith.addf %64, %66 : vector<1x512xf32>
    %c470_i32 = arith.constant 470 : i32
    %68 = tpu.dynamic_rotate %59 by %c470_i32 dim 1 : vector<8x512xf32>, i32 -> vector<8x512xf32>
    %69 = vector.extract_strided_slice %68 {offsets = [0, 0], sizes = [8, 384], strides = [1, 1]} : vector<8x512xf32> to vector<8x384xf32>
    %c0_34 = arith.constant 0 : index
    %c0_35 = arith.constant 0 : index
    %c0_36 = arith.constant 0 : index
    %70 = vector.load %arg8[%c0_34, %c0_35, %c0_36] : memref<1x8x384xf32, #tpu.memory_space<vmem>>, vector<1x8x384xf32>
    %71 = vector.shape_cast %70 : vector<1x8x384xf32> to vector<8x384xf32>
    %72 = vector.shape_cast %69 : vector<8x384xf32> to vector<1x8x384xf32>
    tpu.vector_store %arg8[%c0_34, %c0_35, %c0_36], %72 {strides = array<i32>} : memref<1x8x384xf32, #tpu.memory_space<vmem>>, vector<1x8x384xf32>,
    %c470_i32_37 = arith.constant 470 : i32
    %73 = tpu.dynamic_rotate %67 by %c470_i32_37 dim 1 : vector<1x512xf32>, i32 -> vector<1x512xf32>
    %74 = vector.extract_strided_slice %73 {offsets = [0, 0], sizes = [1, 384], strides = [1, 1]} : vector<1x512xf32> to vector<1x384xf32>
    %c0_38 = arith.constant 0 : index
    %c0_39 = arith.constant 0 : index
    %c0_40 = arith.constant 0 : index
    %75 = vector.load %arg9[%c0_38, %c0_39, %c0_40] : memref<1x1x384xf32, #tpu.memory_space<vmem>>, vector<1x1x384xf32>
    %76 = vector.shape_cast %75 : vector<1x1x384xf32> to vector<1x384xf32>
    %77 = vector.shape_cast %74 : vector<1x384xf32> to vector<1x1x384xf32>
    tpu.vector_store %arg9[%c0_38, %c0_39, %c0_40], %77 {strides = array<i32>} : memref<1x1x384xf32, #tpu.memory_space<vmem>>, vector<1x1x384xf32>,
    return
  }
  func.func @transform_0(%arg0: i32) -> (i32, i32, i32) {
    %c0_i32 = arith.constant 0 : i32
    %c0_i32_0 = arith.constant 0 : i32
    %c0_i32_1 = arith.constant 0 : i32
    return %arg0, %c0_i32, %c0_i32_0 : i32, i32, i32
  }
  func.func @transform_1(%arg0: i32) -> (i32, i32) {
    %c0_i32 = arith.constant 0 : i32
    %c0_i32_0 = arith.constant 0 : i32
    %c0_i32_1 = arith.constant 0 : i32
    return %c0_i32, %c0_i32_0 : i32, i32
  }
  func.func @transform_2(%arg0: i32) -> (i32, i32) {
    %c0_i32 = arith.constant 0 : i32
    %c0_i32_0 = arith.constant 0 : i32
    %c0_i32_1 = arith.constant 0 : i32
    return %c0_i32, %c0_i32_0 : i32, i32
  }
  func.func @transform_3(%arg0: i32) -> (i32, i32) {
    %c0_i32 = arith.constant 0 : i32
    %c0_i32_0 = arith.constant 0 : i32
    %c0_i32_1 = arith.constant 0 : i32
    return %c0_i32, %c0_i32_0 : i32, i32
  }
  func.func @transform_4(%arg0: i32) -> (i32, i32) {
    %c0_i32 = arith.constant 0 : i32
    %c0_i32_0 = arith.constant 0 : i32
    %c0_i32_1 = arith.constant 0 : i32
    return %c0_i32, %c0_i32_0 : i32, i32
  }
  func.func @transform_5(%arg0: i32) -> (i32, i32) {
    %c0_i32 = arith.constant 0 : i32
    %c0_i32_0 = arith.constant 0 : i32
    %c0_i32_1 = arith.constant 0 : i32
    return %c0_i32, %c0_i32_0 : i32, i32
  }
  func.func @transform_6(%arg0: i32) -> (i32, i32) {
    %c0_i32 = arith.constant 0 : i32
    %c0_i32_0 = arith.constant 0 : i32
    %c0_i32_1 = arith.constant 0 : i32
    return %c0_i32, %c0_i32_0 : i32, i32
  }
  func.func @transform_7(%arg0: i32) -> (i32, i32, i32) {
    %c0_i32 = arith.constant 0 : i32
    %c0_i32_0 = arith.constant 0 : i32
    %c0_i32_1 = arith.constant 0 : i32
    return %arg0, %c0_i32, %c0_i32_0 : i32, i32, i32
  }
  func.func @transform_8(%arg0: i32) -> (i32, i32, i32) {
    %c0_i32 = arith.constant 0 : i32
    %c0_i32_0 = arith.constant 0 : i32
    %c0_i32_1 = arith.constant 0 : i32
    return %arg0, %c0_i32, %c0_i32_0 : i32, i32, i32
  }
}

</mosaic_0001>

<llo_original>
// kernel: featlayer_last_forward.1
$region0: #{featlayer_last_forward.1}
  #allocation0 [shape = 'u32[]', space=smem, size = 0x4, offset = 0x4, fixed_abs, tag = 'smem constant byte address 0x4 - core index']
  #allocation1 [shape = 'u32[72,128]{1,0:T(1,128)}', space=vmem, size = 0x9000, scoped, tag = 'internal scratch']
  #allocation2 [shape = 'f32[1,1]{1,0:T(1,128)S(1)}', space=vmem, size = 0x200, scoped, tag = 'scoped memory for featlayer_last_forward.1']
  %s0 = inlined_call_operand.vmem [shape: f32[2,8,512], index: 0, kind: input, shape index: {}]
  %s1 = inlined_call_operand.vmem [shape: f32[8,72], index: 1, kind: input, shape index: {}]
  %s2 = inlined_call_operand.vmem [shape: f32[8,1], index: 2, kind: input, shape index: {}]
  %s3 = inlined_call_operand.vmem [shape: bf16[8,72], index: 3, kind: input, shape index: {}]
  %s4 = inlined_call_operand.vmem [shape: f32[8,1], index: 4, kind: input, shape index: {}]
  %s5 = inlined_call_operand.vmem [shape: f32[8,1], index: 5, kind: input, shape index: {}]
  %s6 = inlined_call_operand.<no memory space> [shape: f32[1,1], index: 6, kind: input, shape index: {}]
  %s7 = inlined_call_operand.vmem [shape: f32[2,8,384], index: 7, kind: output, shape index: {0}]
  %s8 = inlined_call_operand.vmem [shape: f32[2,1,384], index: 8, kind: output, shape index: {1}]
  %9 = xla_tuple %s7, %s8
  %s10 = sld [smem:[#allocation0]]
  $region69: #{featlayer_last_forward.1} parent=0
    _
  %s12 = ssub.s32 1, %s10
  %s13 = scalar_select 0, %s12, %s10
  %v14 = vstv %s6
  %15 = vst [vmem:[#allocation2] sm:$0x1] %v14
  loop: start=0, step=1, limit=4
  $region2: #{featlayer_last_forward.1} parent=0 // loop_pre_header
    _
  $region3: #{featlayer_last_forward.1} parent=0 // loop_header
    %s17 = sphi 0, %s21
    %p18 = scmp.ge.s32.totalorder %s17, 4
    %s27 = sphi 0, %s29
    %s30 = sphi 0, %s27
    %s31 = sphi 0, %s30
    %s47 = sphi 0, %s31
    %s51 = sphi 0, %s51
    %s53 = sphi 0, %s51
    %s54 = sphi 0, %s53
    %s68 = sphi 0, %s54
    %s72 = sphi 0, %s72
    %s74 = sphi 0, %s72
    %s75 = sphi 0, %s74
    %s89 = sphi 0, %s75
    %s93 = sphi 0, %s93
    %s95 = sphi 0, %s93
    %s96 = sphi 0, %s95
    %s110 = sphi 0, %s96
    %s114 = sphi 0, %s114
    %s116 = sphi 0, %s114
    %s117 = sphi 0, %s116
    %s131 = sphi 0, %s117
    %s135 = sphi 0, %s135
    %s137 = sphi 0, %s135
    %s138 = sphi 0, %s137
    %s152 = sphi 0, %s138
    %s156 = sphi 0, %s156
    %s158 = sphi 0, %s156
    %s159 = sphi 0, %s158
    %s173 = sphi 0, %s159
    %s179 = sphi 0, %s181
    %s182 = sphi 0, %s179
    %s183 = sphi 0, %s182
    %s199 = sphi 0, %s183
    %s205 = sphi 0, %s207
    %s208 = sphi 0, %s205
    %s209 = sphi 0, %s208
    %s225 = sphi 0, %s209
  $region4: #{featlayer_last_forward.1} parent=0 // loop_header_branch
    %20 = sbr.rel (%p18) target = $region8
  $region5: #{featlayer_last_forward.1} parent=0 // loop_body
    %s22 = ssub.s32 %s17, 1
    %s23 = ssub.s32 %s17, 2
    %s24 = sadd.s32 %s17, 1
    %s25 = ssub.s32 %s17, %s24
    %p26 = scmp.eq.s32.totalorder %s25, 0
    %s28 = sadd.s32 %s27, 1
    %s29 = scalar_select %p26, %s27, %s28
    %p32 = pneg %p26
    %p33 = scmp.eq.s32.totalorder %s17, 1
    %p34 = por %p32, %p33
    %p35 = scmp.ne.s32.totalorder %s27, %s30
    %p36 = scmp.eq.s32.totalorder %s17, 0
    %p37 = por %p35, %p36
    %p38 = scmp.ne.s32.totalorder %s27, %s30
    %p39 = scmp.eq.s32.totalorder %s22, 1
    %p40 = por %p38, %p39
    %p41 = scmp.ne.s32.totalorder %s30, %s31
    %p42 = scmp.eq.s32.totalorder %s22, 0
    %p43 = por %p41, %p42
    %p44 = scmp.ne.s32.totalorder %s30, %s31
    %p45 = scmp.eq.s32.totalorder %s23, 1
    %p46 = por %p44, %p45
    %p48 = scmp.ne.s32.totalorder %s31, %s47
    %p49 = scmp.eq.s32.totalorder %s23, 0
    %p50 = por %p48, %p49
    %s52 = sadd.s32 %s51, 1
    %p55 = scmp.eq.s32.totalorder %s17, 1
    %p56 = scmp.ne.s32.totalorder %s51, %s53
    %p57 = scmp.eq.s32.totalorder %s17, 0
    %p58 = por %p56, %p57
    %p59 = scmp.ne.s32.totalorder %s51, %s53
    %p60 = scmp.eq.s32.totalorder %s22, 1
    %p61 = por %p59, %p60
    %p62 = scmp.ne.s32.totalorder %s53, %s54
    %p63 = scmp.eq.s32.totalorder %s22, 0
    %p64 = por %p62, %p63
    %p65 = scmp.ne.s32.totalorder %s53, %s54
    %p66 = scmp.eq.s32.totalorder %s23, 1
    %p67 = por %p65, %p66
    %p69 = scmp.ne.s32.totalorder %s54, %s68
    %p70 = scmp.eq.s32.totalorder %s23, 0
    %p71 = por %p69, %p70
    %s73 = sadd.s32 %s72, 1
    %p76 = scmp.eq.s32.totalorder %s17, 1
    %p77 = scmp.ne.s32.totalorder %s72, %s74
    %p78 = scmp.eq.s32.totalorder %s17, 0
    %p79 = por %p77, %p78
    %p80 = scmp.ne.s32.totalorder %s72, %s74
    %p81 = scmp.eq.s32.totalorder %s22, 1
    %p82 = por %p80, %p81
    %p83 = scmp.ne.s32.totalorder %s74, %s75
    %p84 = scmp.eq.s32.totalorder %s22, 0
    %p85 = por %p83, %p84
    %p86 = scmp.ne.s32.totalorder %s74, %s75
    %p87 = scmp.eq.s32.totalorder %s23, 1
    %p88 = por %p86, %p87
    %p90 = scmp.ne.s32.totalorder %s75, %s89
    %p91 = scmp.eq.s32.totalorder %s23, 0
    %p92 = por %p90, %p91
    %s94 = sadd.s32 %s93, 1
    %p97 = scmp.eq.s32.totalorder %s17, 1
    %p98 = scmp.ne.s32.totalorder %s93, %s95
    %p99 = scmp.eq.s32.totalorder %s17, 0
    %p100 = por %p98, %p99
    %p101 = scmp.ne.s32.totalorder %s93, %s95
    %p102 = scmp.eq.s32.totalorder %s22, 1
    %p103 = por %p101, %p102
    %p104 = scmp.ne.s32.totalorder %s95, %s96
    %p105 = scmp.eq.s32.totalorder %s22, 0
    %p106 = por %p104, %p105
    %p107 = scmp.ne.s32.totalorder %s95, %s96
    %p108 = scmp.eq.s32.totalorder %s23, 1
    %p109 = por %p107, %p108
    %p111 = scmp.ne.s32.totalorder %s96, %s110
    %p112 = scmp.eq.s32.totalorder %s23, 0
    %p113 = por %p111, %p112
    %s115 = sadd.s32 %s114, 1
    %p118 = scmp.eq.s32.totalorder %s17, 1
    %p119 = scmp.ne.s32.totalorder %s114, %s116
    %p120 = scmp.eq.s32.totalorder %s17, 0
    %p121 = por %p119, %p120
    %p122 = scmp.ne.s32.totalorder %s114, %s116
    %p123 = scmp.eq.s32.totalorder %s22, 1
    %p124 = por %p122, %p123
    %p125 = scmp.ne.s32.totalorder %s116, %s117
    %p126 = scmp.eq.s32.totalorder %s22, 0
    %p127 = por %p125, %p126
    %p128 = scmp.ne.s32.totalorder %s116, %s117
    %p129 = scmp.eq.s32.totalorder %s23, 1
    %p130 = por %p128, %p129
    %p132 = scmp.ne.s32.totalorder %s117, %s131
    %p133 = scmp.eq.s32.totalorder %s23, 0
    %p134 = por %p132, %p133
    %s136 = sadd.s32 %s135, 1
    %p139 = scmp.eq.s32.totalorder %s17, 1
    %p140 = scmp.ne.s32.totalorder %s135, %s137
    %p141 = scmp.eq.s32.totalorder %s17, 0
    %p142 = por %p140, %p141
    %p143 = scmp.ne.s32.totalorder %s135, %s137
    %p144 = scmp.eq.s32.totalorder %s22, 1
    %p145 = por %p143, %p144
    %p146 = scmp.ne.s32.totalorder %s137, %s138
    %p147 = scmp.eq.s32.totalorder %s22, 0
    %p148 = por %p146, %p147
    %p149 = scmp.ne.s32.totalorder %s137, %s138
    %p150 = scmp.eq.s32.totalorder %s23, 1
    %p151 = por %p149, %p150
    %p153 = scmp.ne.s32.totalorder %s138, %s152
    %p154 = scmp.eq.s32.totalorder %s23, 0
    %p155 = por %p153, %p154
    %s157 = sadd.s32 %s156, 1
    %p160 = scmp.eq.s32.totalorder %s17, 1
    %p161 = scmp.ne.s32.totalorder %s156, %s158
    %p162 = scmp.eq.s32.totalorder %s17, 0
    %p163 = por %p161, %p162
    %p164 = scmp.ne.s32.totalorder %s156, %s158
    %p165 = scmp.eq.s32.totalorder %s22, 1
    %p166 = por %p164, %p165
    %p167 = scmp.ne.s32.totalorder %s158, %s159
    %p168 = scmp.eq.s32.totalorder %s22, 0
    %p169 = por %p167, %p168
    %p170 = scmp.ne.s32.totalorder %s158, %s159
    %p171 = scmp.eq.s32.totalorder %s23, 1
    %p172 = por %p170, %p171
    %p174 = scmp.ne.s32.totalorder %s159, %s173
    %p175 = scmp.eq.s32.totalorder %s23, 0
    %p176 = por %p174, %p175
    %s177 = ssub.s32 %s17, %s24
    %p178 = scmp.eq.s32.totalorder %s177, 0
    %s180 = sadd.s32 %s179, 1
    %s181 = scalar_select %p178, %s179, %s180
    %p184 = pneg %p178
    %p185 = scmp.eq.s32.totalorder %s17, 1
    %p186 = por %p184, %p185
    %p187 = scmp.ne.s32.totalorder %s179, %s182
    %p188 = scmp.eq.s32.totalorder %s17, 0
    %p189 = por %p187, %p188
    %p190 = scmp.ne.s32.totalorder %s179, %s182
    %p191 = scmp.eq.s32.totalorder %s22, 1
    %p192 = por %p190, %p191
    %p193 = scmp.ne.s32.totalorder %s182, %s183
    %p194 = scmp.eq.s32.totalorder %s22, 0
    %p195 = por %p193, %p194
    %p196 = scmp.ne.s32.totalorder %s182, %s183
    %p197 = scmp.eq.s32.totalorder %s23, 1
    %p198 = por %p196, %p197
    %p200 = scmp.ne.s32.totalorder %s183, %s199
    %p201 = scmp.eq.s32.totalorder %s23, 0
    %p202 = por %p200, %p201
    %s203 = ssub.s32 %s17, %s24
    %p204 = scmp.eq.s32.totalorder %s203, 0
    %s206 = sadd.s32 %s205, 1
    %s207 = scalar_select %p204, %s205, %s206
    %p210 = pneg %p204
    %p211 = scmp.eq.s32.totalorder %s17, 1
    %p212 = por %p210, %p211
    %p213 = scmp.ne.s32.totalorder %s205, %s208
    %p214 = scmp.eq.s32.totalorder %s17, 0
    %p215 = por %p213, %p214
    %p216 = scmp.ne.s32.totalorder %s205, %s208
    %p217 = scmp.eq.s32.totalorder %s22, 1
    %p218 = por %p216, %p217
    %p219 = scmp.ne.s32.totalorder %s208, %s209
    %p220 = scmp.eq.s32.totalorder %s22, 0
    %p221 = por %p219, %p220
    %p222 = scmp.ne.s32.totalorder %s208, %s209
    %p223 = scmp.eq.s32.totalorder %s23, 1
    %p224 = por %p222, %p223
    %p226 = scmp.ne.s32.totalorder %s209, %s225
    %p227 = scmp.eq.s32.totalorder %s23, 0
    %p228 = por %p226, %p227
    %p229 = scmp.le.s32.totalorder 1, %s17
    %p230 = scmp.lt.s32.totalorder %s17, 3
    %p231 = pnand %p229, %p230
    %p232 = pneg %p231
    // Predicated region
    $region9: #{featlayer_last_forward.1} parent=5 // pred_check
      _
    $region10: #{featlayer_last_forward.1} parent=5 // pred_check_branch
      %234 = sbr.rel (%p231) target = $region12
    $region11: #{featlayer_last_forward.1} parent=5 // pred_region
      %s235 = ssub.s32 %s17, 1
      // Predicated region
      $region13: #{featlayer_last_forward.1} parent=11 // pred_check
        %p236 = pneg %p64
      $region14: #{featlayer_last_forward.1} parent=11 // pred_check_branch
        %238 = sbr.rel (%p236) target = $region16
      $region15: #{featlayer_last_forward.1} parent=11 // pred_region
        _
      $region16: #{featlayer_last_forward.1} parent=11 // pred_fallthru
        _
      // Predicated region
      $region17: #{featlayer_last_forward.1} parent=11 // pred_check
        %p239 = pneg %p85
      $region18: #{featlayer_last_forward.1} parent=11 // pred_check_branch
        %241 = sbr.rel (%p239) target = $region20
      $region19: #{featlayer_last_forward.1} parent=11 // pred_region
        _
      $region20: #{featlayer_last_forward.1} parent=11 // pred_fallthru
        _
      // Predicated region
      $region21: #{featlayer_last_forward.1} parent=11 // pred_check
        %p242 = pneg %p106
      $region22: #{featlayer_last_forward.1} parent=11 // pred_check_branch
        %244 = sbr.rel (%p242) target = $region24
      $region23: #{featlayer_last_forward.1} parent=11 // pred_region
        _
      $region24: #{featlayer_last_forward.1} parent=11 // pred_fallthru
        _
      // Predicated region
      $region25: #{featlayer_last_forward.1} parent=11 // pred_check
        %p245 = pneg %p127
      $region26: #{featlayer_last_forward.1} parent=11 // pred_check_branch
        %247 = sbr.rel (%p245) target = $region28
      $region27: #{featlayer_last_forward.1} parent=11 // pred_region
        _
      $region28: #{featlayer_last_forward.1} parent=11 // pred_fallthru
        _
      // Predicated region
      $region29: #{featlayer_last_forward.1} parent=11 // pred_check
        %p248 = pneg %p148
      $region30: #{featlayer_last_forward.1} parent=11 // pred_check_branch
        %250 = sbr.rel (%p248) target = $region32
      $region31: #{featlayer_last_forward.1} parent=11 // pred_region
        _
      $region32: #{featlayer_last_forward.1} parent=11 // pred_fallthru
        _
      // Predicated region
      $region33: #{featlayer_last_forward.1} parent=11 // pred_check
        %p251 = pneg %p169
      $region34: #{featlayer_last_forward.1} parent=11 // pred_check_branch
        %253 = sbr.rel (%p251) target = $region36
      $region35: #{featlayer_last_forward.1} parent=11 // pred_region
        _
      $region36: #{featlayer_last_forward.1} parent=11 // pred_fallthru
        _
    $region12: #{featlayer_last_forward.1} parent=5 // pred_fallthru
      _
    %p254 = scmp.lt.s32.totalorder %s17, 2
    // Predicated region
    $region37: #{featlayer_last_forward.1} parent=5 // pred_check
      %p255 = pneg %p254
    $region38: #{featlayer_last_forward.1} parent=5 // pred_check_branch
      %257 = sbr.rel (%p255) target = $region40
    $region39: #{featlayer_last_forward.1} parent=5 // pred_region
      // Predicated region
      $region41: #{featlayer_last_forward.1} parent=39 // pred_check
        %p258 = pneg %p37
      $region42: #{featlayer_last_forward.1} parent=39 // pred_check_branch
        %260 = sbr.rel (%p258) target = $region44
      $region43: #{featlayer_last_forward.1} parent=39 // pred_region
        %p261 = scmp.lt.s32.totalorder %s17, 1
        %s262 = scalar_select %p261, %s17, 1
        %s263 = smul.addr %s262, 4
        %s264 = smul.addr %s263, 8
        %s265 = scalar_lea.vmem %s0, %s264
      $region44: #{featlayer_last_forward.1} parent=39 // pred_fallthru
        _
    $region40: #{featlayer_last_forward.1} parent=5 // pred_fallthru
      _
    %p266 = scmp.le.s32.totalorder 1, %s17
    %p267 = scmp.lt.s32.totalorder %s17, 3
    %p268 = pnand %p266, %p267
    %p269 = pneg %p268
    // Predicated region
    $region45: #{featlayer_last_forward.1} parent=5 // pred_check
      _
    $region46: #{featlayer_last_forward.1} parent=5 // pred_check_branch
      %271 = sbr.rel (%p268) target = $region48
    $region47: #{featlayer_last_forward.1} parent=5 // pred_region
      %s272 = ssub.s32 %s17, 1
      %p273 = scmp.lt.s32.totalorder %s22, 1
      %s274 = scalar_select %p273, %s22, 1
      %s275 = smul.addr %s274, 4
      %s276 = smul.addr %s275, 8
      %s277 = scalar_lea.vmem %s0, %s276
      %p278 = pneg %p43
      %p279 = pneg %p40
      %p280 = pneg %p64
      %p281 = pneg %p61
      %p282 = pneg %p85
      %p283 = pneg %p82
      %p284 = pneg %p106
      %p285 = pneg %p103
      %p286 = pneg %p127
      %p287 = pneg %p124
      %p288 = pneg %p148
      %p289 = pneg %p145
      %p290 = pneg %p169
      %p291 = pneg %p166
      %p292 = pneg %p195
      %p293 = pneg %p192
      %p294 = scmp.lt.s32.totalorder %s22, 1
      %s295 = scalar_select %p294, %s22, 1
      %s296 = smul.addr %s295, 3
      %s297 = smul.addr %s296, 8
      %s298 = scalar_lea.vmem %s7, %s297
      %p299 = pneg %p221
      %p300 = pneg %p218
      %p301 = scmp.lt.s32.totalorder %s22, 1
      %s302 = scalar_select %p301, %s22, 1
      %s303 = smul.addr %s302, 3
      %s304 = scalar_lea.vmem %s8, %s303
      %p305 = scmp.lt.s32.totalorder %s22, 1
      %s306 = scalar_select %p305, %s22, 1
      %s307 = smul.addr %s306, 4
      %s308 = smul.addr %s307, 8
      %s309 = scalar_lea.vmem %s0, %s308
      %p310 = scmp.lt.s32.totalorder %s22, 1
      %s311 = scalar_select %p310, %s22, 1
      %s312 = smul.addr %s311, 3
      %s313 = smul.addr %s312, 8
      %s314 = scalar_lea.vmem %s7, %s313
      %p315 = scmp.lt.s32.totalorder %s22, 1
      %s316 = scalar_select %p315, %s22, 1
      %s317 = smul.addr %s316, 3
      %s318 = scalar_lea.vmem %s8, %s317
      %v320 = vld [vmem:[%s309] sm:$0xff]
      %v321 = vld [vmem:[%s309 + $0x8] sm:$0xff]
      %v322 = vld [vmem:[%s309 + $0x10] sm:$0xff]
      %v323 = vld [vmem:[%s309 + $0x18] sm:$0xff]
      %324 = vrot.lane.b32.xlu0 %v320, 21
      %v325 = vpop.permute.xlu0 %324
      %326 = vrot.lane.b32.xlu0 %v321, 21
      %v327 = vpop.permute.xlu0 %326
      %328 = vrot.lane.b32.xlu0 %v322, 21
      %v329 = vpop.permute.xlu0 %328
      %330 = vrot.lane.b32.xlu0 %v323, 21
      %v331 = vpop.permute.xlu0 %330
      %v332 = vlaneseq
      %v333 = vand.u32 %v332, 127
      %vm334 = vcmp.lt.s32.totalorder %v333, 21
      %v335 = vsel %vm334, %v329, %v331
      %v336 = vsel %vm334, %v327, %v329
      %v337 = vsel %vm334, %v325, %v327
      %v338 = vsel %vm334, %v331, %v325
      %339 = vrot.lane.b32.xlu0 %v320, 20
      %v340 = vpop.permute.xlu0 %339
      %341 = vrot.lane.b32.xlu0 %v321, 20
      %v342 = vpop.permute.xlu0 %341
      %343 = vrot.lane.b32.xlu0 %v322, 20
      %v344 = vpop.permute.xlu0 %343
      %345 = vrot.lane.b32.xlu0 %v323, 20
      %v346 = vpop.permute.xlu0 %345
      %vm347 = vcmp.lt.s32.totalorder %v333, 20
      %v348 = vsel %vm347, %v344, %v346
      %v349 = vsel %vm347, %v342, %v344
      %v350 = vsel %vm347, %v340, %v342
      %v351 = vsel %vm347, %v346, %v340
      %352 = vrot.lane.b32.xlu0 %v320, 19
      %v353 = vpop.permute.xlu0 %352
      %354 = vrot.lane.b32.xlu0 %v321, 19
      %v355 = vpop.permute.xlu0 %354
      %356 = vrot.lane.b32.xlu0 %v322, 19
      %v357 = vpop.permute.xlu0 %356
      %358 = vrot.lane.b32.xlu0 %v323, 19
      %v359 = vpop.permute.xlu0 %358
      %vm360 = vcmp.lt.s32.totalorder %v333, 19
      %v361 = vsel %vm360, %v357, %v359
      %v362 = vsel %vm360, %v355, %v357
      %v363 = vsel %vm360, %v353, %v355
      %v364 = vsel %vm360, %v359, %v353
      %365 = vrot.lane.b32.xlu0 %v320, 1
      %v366 = vpop.permute.xlu0 %365
      %367 = vrot.lane.b32.xlu0 %v321, 1
      %v368 = vpop.permute.xlu0 %367
      %369 = vrot.lane.b32.xlu0 %v322, 1
      %v370 = vpop.permute.xlu0 %369
      %371 = vrot.lane.b32.xlu0 %v323, 1
      %v372 = vpop.permute.xlu0 %371
      %vm373 = vcmp.lt.s32.totalorder %v333, 1
      %v374 = vsel %vm373, %v370, %v372
      %v375 = vsel %vm373, %v368, %v370
      %v376 = vsel %vm373, %v366, %v368
      %v377 = vsel %vm373, %v372, %v366
      %378 = vrot.lane.b32.xlu0 %v320, 127
      %v379 = vpop.permute.xlu0 %378
      %380 = vrot.lane.b32.xlu0 %v321, 127
      %v381 = vpop.permute.xlu0 %380
      %382 = vrot.lane.b32.xlu0 %v322, 127
      %v383 = vpop.permute.xlu0 %382
      %384 = vrot.lane.b32.xlu0 %v323, 127
      %v385 = vpop.permute.xlu0 %384
      %vm386 = vcmp.lt.s32.totalorder %v333, 127
      %v387 = vsel %vm386, %v383, %v385
      %v388 = vsel %vm386, %v381, %v383
      %v389 = vsel %vm386, %v379, %v381
      %v390 = vsel %vm386, %v385, %v379
      %391 = vrot.lane.b32.xlu0 %v320, 109
      %v392 = vpop.permute.xlu0 %391
      %393 = vrot.lane.b32.xlu0 %v321, 109
      %v394 = vpop.permute.xlu0 %393
      %395 = vrot.lane.b32.xlu0 %v322, 109
      %v396 = vpop.permute.xlu0 %395
      %397 = vrot.lane.b32.xlu0 %v323, 109
      %v398 = vpop.permute.xlu0 %397
      %vm399 = vcmp.lt.s32.totalorder %v333, 109
      %v400 = vsel %vm399, %v396, %v398
      %v401 = vsel %vm399, %v394, %v396
      %v402 = vsel %vm399, %v392, %v394
      %v403 = vsel %vm399, %v398, %v392
      %404 = vrot.lane.b32.xlu0 %v320, 108
      %v405 = vpop.permute.xlu0 %404
      %406 = vrot.lane.b32.xlu0 %v321, 108
      %v407 = vpop.permute.xlu0 %406
      %408 = vrot.lane.b32.xlu0 %v322, 108
      %v409 = vpop.permute.xlu0 %408
      %410 = vrot.lane.b32.xlu0 %v323, 108
      %v411 = vpop.permute.xlu0 %410
      %vm412 = vcmp.lt.s32.totalorder %v333, 108
      %v413 = vsel %vm412, %v409, %v411
      %v414 = vsel %vm412, %v407, %v409
      %v415 = vsel %vm412, %v405, %v407
      %v416 = vsel %vm412, %v411, %v405
      %417 = vrot.lane.b32.xlu0 %v320, 107
      %v418 = vpop.permute.xlu0 %417
      %419 = vrot.lane.b32.xlu0 %v321, 107
      %v420 = vpop.permute.xlu0 %419
      %421 = vrot.lane.b32.xlu0 %v322, 107
      %v422 = vpop.permute.xlu0 %421
      %423 = vrot.lane.b32.xlu0 %v323, 107
      %v424 = vpop.permute.xlu0 %423
      %vm425 = vcmp.lt.s32.totalorder %v333, 107
      %v426 = vsel %vm425, %v422, %v424
      %v427 = vsel %vm425, %v420, %v422
      %v428 = vsel %vm425, %v418, %v420
      %v429 = vsel %vm425, %v424, %v418
      %v430 = vld [vmem:[%s1] sm:$0xff]
      %v431 = vld [vmem:[%s2] sm:$0xff]
      %433 = vset.pattern.permute.xlu0 0
      %434 = vperm.xlu0 %433, %v431
      %v435 = vpop.permute.xlu0 %434
      %vm437 = vcmask 588800
      %v439 = vsel %vm437, %v430, 0
      %441 = vmatpush.msra.mxu0 0.0
      %442 = vmatpush.msra.mxu0 0.0
      %443 = vmatpush.msra.mxu0 0.0
      %444 = vmatpush.msra.mxu0 0.0
      %445 = vmatpush.msra.mxu0 0.0
      %446 = vmatpush.msra.mxu0 0.0
      %447 = vmatpush.msra.mxu0 0.0
      %448 = vmatpush.msra.mxu0 %v428
      %449 = vmatpush.msra.mxu0 %v415
      %450 = vmatpush.msra.mxu0 %v402
      %451 = vmatpush.msra.mxu0 %v389
      %452 = vmatpush.msra.mxu0 %v320
      %453 = vmatpush.msra.mxu0 %v377
      %454 = vmatpush.msra.mxu0 %v364
      %455 = vmatpush.msra.mxu0 %v351
      %456 = vmatpush.msra.mxu0 %v338
      %457 = vmatmul.f32.gmra.mxu0 %v439
      %v458 = vpop.f32.mrf.mxu0
      %v459 = vadd.f32 %v435, %v458
      %460 = vdwg.mxu0
      %461 = vmatpush.msra.mxu0 0.0
      %462 = vmatpush.msra.mxu0 0.0
      %463 = vmatpush.msra.mxu0 0.0
      %464 = vmatpush.msra.mxu0 0.0
      %465 = vmatpush.msra.mxu0 0.0
      %466 = vmatpush.msra.mxu0 0.0
      %467 = vmatpush.msra.mxu0 0.0
      %468 = vmatpush.msra.mxu0 %v427
      %469 = vmatpush.msra.mxu0 %v414
      %470 = vmatpush.msra.mxu0 %v401
      %471 = vmatpush.msra.mxu0 %v388
      %472 = vmatpush.msra.mxu0 %v321
      %473 = vmatpush.msra.mxu0 %v376
      %474 = vmatpush.msra.mxu0 %v363
      %475 = vmatpush.msra.mxu0 %v350
      %476 = vmatpush.msra.mxu0 %v337
      %477 = vmatmul.f32.gmra.mxu0 %v439
      %v478 = vpop.f32.mrf.mxu0
      %v479 = vadd.f32 %v435, %v478
      %480 = vdwg.mxu0
      %481 = vmatpush.msra.mxu0 0.0
      %482 = vmatpush.msra.mxu0 0.0
      %483 = vmatpush.msra.mxu0 0.0
      %484 = vmatpush.msra.mxu0 0.0
      %485 = vmatpush.msra.mxu0 0.0
      %486 = vmatpush.msra.mxu0 0.0
      %487 = vmatpush.msra.mxu0 0.0
      %488 = vmatpush.msra.mxu0 %v426
      %489 = vmatpush.msra.mxu0 %v413
      %490 = vmatpush.msra.mxu0 %v400
      %491 = vmatpush.msra.mxu0 %v387
      %492 = vmatpush.msra.mxu0 %v322
      %493 = vmatpush.msra.mxu0 %v375
      %494 = vmatpush.msra.mxu0 %v362
      %495 = vmatpush.msra.mxu0 %v349
      %496 = vmatpush.msra.mxu0 %v336
      %497 = vmatmul.f32.gmra.mxu0 %v439
      %v498 = vpop.f32.mrf.mxu0
      %v499 = vadd.f32 %v435, %v498
      %500 = vdwg.mxu0
      %501 = vmatpush.msra.mxu0 0.0
      %502 = vmatpush.msra.mxu0 0.0
      %503 = vmatpush.msra.mxu0 0.0
      %504 = vmatpush.msra.mxu0 0.0
      %505 = vmatpush.msra.mxu0 0.0
      %506 = vmatpush.msra.mxu0 0.0
      %507 = vmatpush.msra.mxu0 0.0
      %508 = vmatpush.msra.mxu0 %v429
      %509 = vmatpush.msra.mxu0 %v416
      %510 = vmatpush.msra.mxu0 %v403
      %511 = vmatpush.msra.mxu0 %v390
      %512 = vmatpush.msra.mxu0 %v323
      %513 = vmatpush.msra.mxu0 %v374
      %514 = vmatpush.msra.mxu0 %v361
      %515 = vmatpush.msra.mxu0 %v348
      %516 = vmatpush.msra.mxu0 %v335
      %517 = vmatmul.f32.gmra.mxu0 %v439
      %v518 = vpop.f32.mrf.mxu0
      %v519 = vadd.f32 %v435, %v518
      %520 = vdwg.mxu0
      %v521 = vmax.f32 %v459, 0.0
      %v522 = vmax.f32 %v479, 0.0
      %v523 = vmax.f32 %v499, 0.0
      %v524 = vmax.f32 %v519, 0.0
      %v525 = vadd.s32 %v333, 128
      %v526 = vadd.s32 %v333, 256
      %v527 = vadd.s32 %v333, 384
      %v528 = vcvt.s32.f32 %v333
      %v529 = vcvt.s32.f32 %v525
      %v530 = vcvt.s32.f32 %v526
      %v531 = vcvt.s32.f32 %v527
      %v532 = vadd.f32 %v528, 0.5
      %v533 = vadd.f32 %v529, 0.5
      %v534 = vadd.f32 %v530, 0.5
      %v535 = vadd.f32 %v531, 0.5
      %v536 = vmul.f32 %v532, 0.05
      %v537 = vmul.f32 %v533, 0.05
      %v538 = vmul.f32 %v534, 0.05
      %v539 = vmul.f32 %v535, 0.05
      %v540 = vfloor.f32 %v536
      %v541 = vfloor.f32 %v537
      %v542 = vfloor.f32 %v538
      %v543 = vfloor.f32 %v539
      %v544 = vmul.f32 %v540, 20.0
      %v545 = vmul.f32 %v541, 20.0
      %v546 = vmul.f32 %v542, 20.0
      %v547 = vmul.f32 %v543, 20.0
      %v548 = vsub.f32 %v528, %v544
      %v549 = vsub.f32 %v529, %v545
      %v550 = vsub.f32 %v530, %v546
      %v551 = vsub.f32 %v531, %v547
      %vm552 = vcmp.ge.f32.partialorder %v540, 2.0
      %vm553 = vcmp.ge.f32.partialorder %v541, 2.0
      %vm554 = vcmp.ge.f32.partialorder %v542, 2.0
      %vm555 = vcmp.ge.f32.partialorder %v543, 2.0
      %vm556 = vcmp.lt.f32.partialorder %v540, 18.0
      %vm557 = vcmp.lt.f32.partialorder %v541, 18.0
      %vm558 = vcmp.lt.f32.partialorder %v542, 18.0
      %vm559 = vcmp.lt.f32.partialorder %v543, 18.0
      %vm560 = vmand %vm552, %vm556
      %vm561 = vmand %vm553, %vm557
      %vm562 = vmand %vm554, %vm558
      %vm563 = vmand %vm555, %vm559
      %vm564 = vcmp.ge.f32.partialorder %v548, 2.0
      %vm565 = vcmp.ge.f32.partialorder %v549, 2.0
      %vm566 = vcmp.ge.f32.partialorder %v550, 2.0
      %vm567 = vcmp.ge.f32.partialorder %v551, 2.0
      %vm568 = vmand %vm560, %vm564
      %vm569 = vmand %vm561, %vm565
      %vm570 = vmand %vm562, %vm566
      %vm571 = vmand %vm563, %vm567
      %vm572 = vcmp.lt.f32.partialorder %v548, 18.0
      %vm573 = vcmp.lt.f32.partialorder %v549, 18.0
      %vm574 = vcmp.lt.f32.partialorder %v550, 18.0
      %vm575 = vcmp.lt.f32.partialorder %v551, 18.0
      %vm576 = vmand %vm568, %vm572
      %vm577 = vmand %vm569, %vm573
      %vm578 = vmand %vm570, %vm574
      %vm579 = vmand %vm571, %vm575
      %v580 = vsel %vm576, 1, 0
      %v581 = vsel %vm577, 1, 0
      %v582 = vsel %vm578, 1, 0
      %v583 = vsel %vm579, 1, 0
      %vm584 = vcmp.eq.s32.totalorder %v580, 1
      %vm585 = vcmp.eq.s32.totalorder %v581, 1
      %vm586 = vcmp.eq.s32.totalorder %v582, 1
      %vm587 = vcmp.eq.s32.totalorder %v583, 1
      %v588 = vsel %vm584, %v521, 0.0
      %v589 = vsel %vm585, %v522, 0.0
      %v590 = vsel %vm586, %v523, 0.0
      %v591 = vsel %vm587, %v524, 0.0
      %592 = vrot.lane.b32.xlu0 %v588, 21
      %v593 = vpop.permute.xlu0 %592
      %594 = vrot.lane.b32.xlu0 %v589, 21
      %v595 = vpop.permute.xlu0 %594
      %596 = vrot.lane.b32.xlu0 %v590, 21
      %v597 = vpop.permute.xlu0 %596
      %598 = vrot.lane.b32.xlu0 %v591, 21
      %v599 = vpop.permute.xlu0 %598
      %v600 = vsel %vm334, %v597, %v599
      %v601 = vsel %vm334, %v595, %v597
      %v602 = vsel %vm334, %v593, %v595
      %v603 = vsel %vm334, %v599, %v593
      %604 = vrot.lane.b32.xlu0 %v588, 20
      %v605 = vpop.permute.xlu0 %604
      %606 = vrot.lane.b32.xlu0 %v589, 20
      %v607 = vpop.permute.xlu0 %606
      %608 = vrot.lane.b32.xlu0 %v590, 20
      %v609 = vpop.permute.xlu0 %608
      %610 = vrot.lane.b32.xlu0 %v591, 20
      %v611 = vpop.permute.xlu0 %610
      %v612 = vsel %vm347, %v609, %v611
      %v613 = vsel %vm347, %v607, %v609
      %v614 = vsel %vm347, %v605, %v607
      %v615 = vsel %vm347, %v611, %v605
      %616 = vrot.lane.b32.xlu0 %v588, 19
      %v617 = vpop.permute.xlu0 %616
      %618 = vrot.lane.b32.xlu0 %v589, 19
      %v619 = vpop.permute.xlu0 %618
      %620 = vrot.lane.b32.xlu0 %v590, 19
      %v621 = vpop.permute.xlu0 %620
      %622 = vrot.lane.b32.xlu0 %v591, 19
      %v623 = vpop.permute.xlu0 %622
      %v624 = vsel %vm360, %v621, %v623
      %v625 = vsel %vm360, %v619, %v621
      %v626 = vsel %vm360, %v617, %v619
      %v627 = vsel %vm360, %v623, %v617
      %628 = vrot.lane.b32.xlu0 %v588, 1
      %v629 = vpop.permute.xlu0 %628
      %630 = vrot.lane.b32.xlu0 %v589, 1
      %v631 = vpop.permute.xlu0 %630
      %632 = vrot.lane.b32.xlu0 %v590, 1
      %v633 = vpop.permute.xlu0 %632
      %634 = vrot.lane.b32.xlu0 %v591, 1
      %v635 = vpop.permute.xlu0 %634
      %v636 = vsel %vm373, %v633, %v635
      %v637 = vsel %vm373, %v631, %v633
      %v638 = vsel %vm373, %v629, %v631
      %v639 = vsel %vm373, %v635, %v629
      %640 = vrot.lane.b32.xlu0 %v588, 127
      %v641 = vpop.permute.xlu0 %640
      %642 = vrot.lane.b32.xlu0 %v589, 127
      %v643 = vpop.permute.xlu0 %642
      %644 = vrot.lane.b32.xlu0 %v590, 127
      %v645 = vpop.permute.xlu0 %644
      %646 = vrot.lane.b32.xlu0 %v591, 127
      %v647 = vpop.permute.xlu0 %646
      %v648 = vsel %vm386, %v645, %v647
      %v649 = vsel %vm386, %v643, %v645
      %v650 = vsel %vm386, %v641, %v643
      %v651 = vsel %vm386, %v647, %v641
      %652 = vrot.lane.b32.xlu0 %v588, 109
      %v653 = vpop.permute.xlu0 %652
      %654 = vrot.lane.b32.xlu0 %v589, 109
      %v655 = vpop.permute.xlu0 %654
      %656 = vrot.lane.b32.xlu0 %v590, 109
      %v657 = vpop.permute.xlu0 %656
      %658 = vrot.lane.b32.xlu0 %v591, 109
      %v659 = vpop.permute.xlu0 %658
      %v660 = vsel %vm399, %v657, %v659
      %v661 = vsel %vm399, %v655, %v657
      %v662 = vsel %vm399, %v653, %v655
      %v663 = vsel %vm399, %v659, %v653
      %664 = vrot.lane.b32.xlu0 %v588, 108
      %v665 = vpop.permute.xlu0 %664
      %666 = vrot.lane.b32.xlu0 %v589, 108
      %v667 = vpop.permute.xlu0 %666
      %668 = vrot.lane.b32.xlu0 %v590, 108
      %v669 = vpop.permute.xlu0 %668
      %670 = vrot.lane.b32.xlu0 %v591, 108
      %v671 = vpop.permute.xlu0 %670
      %v672 = vsel %vm412, %v669, %v671
      %v673 = vsel %vm412, %v667, %v669
      %v674 = vsel %vm412, %v665, %v667
      %v675 = vsel %vm412, %v671, %v665
      %676 = vrot.lane.b32.xlu0 %v588, 107
      %v677 = vpop.permute.xlu0 %676
      %678 = vrot.lane.b32.xlu0 %v589, 107
      %v679 = vpop.permute.xlu0 %678
      %680 = vrot.lane.b32.xlu0 %v590, 107
      %v681 = vpop.permute.xlu0 %680
      %682 = vrot.lane.b32.xlu0 %v591, 107
      %v683 = vpop.permute.xlu0 %682
      %v684 = vsel %vm425, %v681, %v683
      %v685 = vsel %vm425, %v679, %v681
      %v686 = vsel %vm425, %v677, %v679
      %v687 = vsel %vm425, %v683, %v677
      %v688 = vpack.c.bf16 %v615, %v603
      %v689 = vpack.c.bf16 %v614, %v602
      %v690 = vpack.c.bf16 %v613, %v601
      %v691 = vpack.c.bf16 %v612, %v600
      %v692 = vpack.c.bf16 %v639, %v627
      %v693 = vpack.c.bf16 %v638, %v626
      %v694 = vpack.c.bf16 %v637, %v625
      %v695 = vpack.c.bf16 %v636, %v624
      %v696 = vpack.c.bf16 %v650, %v588
      %v697 = vpack.c.bf16 %v649, %v589
      %v698 = vpack.c.bf16 %v648, %v590
      %v699 = vpack.c.bf16 %v651, %v591
      %v700 = vpack.c.bf16 %v674, %v662
      %v701 = vpack.c.bf16 %v673, %v661
      %v702 = vpack.c.bf16 %v672, %v660
      %v703 = vpack.c.bf16 %v675, %v663
      %v704 = vpack.c.bf16 %v686, %v686
      %v705 = vpack.c.bf16 %v685, %v685
      %v706 = vpack.c.bf16 %v684, %v684
      %v707 = vpack.c.bf16 %v687, %v687
      %v708 = vld [vmem:[%s3] sm:$0xf]
      %v709 = vld [vmem:[%s4] sm:$0xff]
      %711 = vset.pattern.permute.xlu0 0
      %712 = vperm.xlu0 %711, %v709
      %v713 = vpop.permute.xlu0 %712
      %v716 = vsel %vm437, %v708, 0
      %vm718 = vcmask 1043456
      %v720 = vsel %vm718, %v704, 0
      %v723 = vsel %vm718, %v705, 0
      %v726 = vsel %vm718, %v706, 0
      %v729 = vsel %vm718, %v707, 0
      %731 = vmatpush.bf16.msra.mxu0 0
      %732 = vmatpush.bf16.msra.mxu0 0
      %733 = vmatpush.bf16.msra.mxu0 0
      %734 = vmatpush.bf16.msra.mxu0 %v720
      %735 = vmatpush.bf16.msra.mxu0 %v700
      %736 = vmatpush.bf16.msra.mxu0 %v696
      %737 = vmatpush.bf16.msra.mxu0 %v692
      %738 = vmatpush.bf16.msra.mxu0 %v688
      %739 = vmatmul.bf16.gmra.mxu0 %v716
      %v740 = vpop.f32.mrf.mxu0
      %v741 = vadd.f32 %v713, %v740
      %v742 = vpop.f32.mrf.mxu0
      %743 = vdwg.mxu0
      %744 = vmatpush.bf16.msra.mxu0 0
      %745 = vmatpush.bf16.msra.mxu0 0
      %746 = vmatpush.bf16.msra.mxu0 0
      %747 = vmatpush.bf16.msra.mxu0 %v723
      %748 = vmatpush.bf16.msra.mxu0 %v701
      %749 = vmatpush.bf16.msra.mxu0 %v697
      %750 = vmatpush.bf16.msra.mxu0 %v693
      %751 = vmatpush.bf16.msra.mxu0 %v689
      %752 = vmatmul.bf16.gmra.mxu0 %v716
      %v753 = vpop.f32.mrf.mxu0
      %v754 = vadd.f32 %v713, %v753
      %v755 = vpop.f32.mrf.mxu0
      %756 = vdwg.mxu0
      %757 = vmatpush.bf16.msra.mxu0 0
      %758 = vmatpush.bf16.msra.mxu0 0
      %759 = vmatpush.bf16.msra.mxu0 0
      %760 = vmatpush.bf16.msra.mxu0 %v726
      %761 = vmatpush.bf16.msra.mxu0 %v702
      %762 = vmatpush.bf16.msra.mxu0 %v698
      %763 = vmatpush.bf16.msra.mxu0 %v694
      %764 = vmatpush.bf16.msra.mxu0 %v690
      %765 = vmatmul.bf16.gmra.mxu0 %v716
      %v766 = vpop.f32.mrf.mxu0
      %v767 = vadd.f32 %v713, %v766
      %v768 = vpop.f32.mrf.mxu0
      %769 = vdwg.mxu0
      %770 = vmatpush.bf16.msra.mxu0 0
      %771 = vmatpush.bf16.msra.mxu0 0
      %772 = vmatpush.bf16.msra.mxu0 0
      %773 = vmatpush.bf16.msra.mxu0 %v729
      %774 = vmatpush.bf16.msra.mxu0 %v703
      %775 = vmatpush.bf16.msra.mxu0 %v699
      %776 = vmatpush.bf16.msra.mxu0 %v695
      %777 = vmatpush.bf16.msra.mxu0 %v691
      %778 = vmatmul.bf16.gmra.mxu0 %v716
      %v779 = vpop.f32.mrf.mxu0
      %v780 = vadd.f32 %v713, %v779
      %v781 = vpop.f32.mrf.mxu0
      %782 = vdwg.mxu0
      %v783 = vmax.f32 %v741, 0.0
      %v784 = vmax.f32 %v754, 0.0
      %v785 = vmax.f32 %v767, 0.0
      %v786 = vmax.f32 %v780, 0.0
      %v787 = vld [vmem:[%s5] sm:$0xff]
      %789 = vset.pattern.permute.xlu0 0
      %790 = vperm.xlu0 %789, %v787
      %v791 = vpop.permute.xlu0 %790
      %v793 = vmul.f32 %v783, %v791
      %v794 = vmul.f32 %v784, %v791
      %v795 = vmul.f32 %v785, %v791
      %v796 = vmul.f32 %v786, %v791
      %v797 = vrot.slane %v793, 4
      %v798 = vadd.f32 %v793, %v797
      %v799 = vrot.slane %v798, 2
      %v800 = vadd.f32 %v798, %v799
      %v801 = vrot.slane %v800, 1
      %v802 = vadd.f32 %v800, %v801
      %v803 = vrot.slane %v794, 4
      %v804 = vadd.f32 %v794, %v803
      %v805 = vrot.slane %v804, 2
      %v806 = vadd.f32 %v804, %v805
      %v807 = vrot.slane %v806, 1
      %v808 = vadd.f32 %v806, %v807
      %v809 = vrot.slane %v795, 4
      %v810 = vadd.f32 %v795, %v809
      %v811 = vrot.slane %v810, 2
      %v812 = vadd.f32 %v810, %v811
      %v813 = vrot.slane %v812, 1
      %v814 = vadd.f32 %v812, %v813
      %v815 = vrot.slane %v796, 4
      %v816 = vadd.f32 %v796, %v815
      %v817 = vrot.slane %v816, 2
      %v818 = vadd.f32 %v816, %v817
      %v819 = vrot.slane %v818, 1
      %v820 = vadd.f32 %v818, %v819
      %v821 = vld [vmem:[#allocation2] sm:$0x1]
      %823 = vset.pattern.permute.xlu0 0
      %824 = vperm.xlu0 %823, %v821
      %v825 = vpop.permute.xlu0 %824
      %v827 = vperm.slane %v825, 0
      %v828 = vadd.f32 %v802, %v827
      %v829 = vadd.f32 %v808, %v827
      %v830 = vadd.f32 %v814, %v827
      %v831 = vadd.f32 %v820, %v827
      %832 = vrot.lane.b32.xlu0 %v783, 86
      %v833 = vpop.permute.xlu0 %832
      %834 = vrot.lane.b32.xlu0 %v784, 86
      %v835 = vpop.permute.xlu0 %834
      %836 = vrot.lane.b32.xlu0 %v785, 86
      %v837 = vpop.permute.xlu0 %836
      %838 = vrot.lane.b32.xlu0 %v786, 86
      %v839 = vpop.permute.xlu0 %838
      %vm840 = vcmp.lt.s32.totalorder %v333, 86
      %v841 = vsel %vm840, %v837, %v839
      %v842 = vsel %vm840, %v835, %v837
      %v843 = vsel %vm840, %v833, %v835
      %844 = vst [vmem:[%s314] sm:$0xff] %v843
      %845 = vst [vmem:[%s314 + $0x8] sm:$0xff] %v842
      %846 = vst [vmem:[%s314 + $0x10] sm:$0xff] %v841
      %847 = vrot.lane.b32.xlu0 %v828, 86
      %v848 = vpop.permute.xlu0 %847
      %849 = vrot.lane.b32.xlu0 %v829, 86
      %v850 = vpop.permute.xlu0 %849
      %851 = vrot.lane.b32.xlu0 %v830, 86
      %v852 = vpop.permute.xlu0 %851
      %853 = vrot.lane.b32.xlu0 %v831, 86
      %v854 = vpop.permute.xlu0 %853
      %v855 = vsel %vm840, %v852, %v854
      %v856 = vsel %vm840, %v850, %v852
      %v857 = vsel %vm840, %v848, %v850
      %v861 = vrot.slane %v856, 7
      %v862 = vrot.slane %v855, 6
      %vm863 = vcmask 1040384
      %v864 = vsel %vm863, %v857, %v861
      %vm865 = vcmask 1041408
      %v866 = vsel %vm865, %v864, %v862
      %v868 = vlaneseq
      %vm869 = vcmp.ge.s32.totalorder %v868, 0
      %vm870 = vcmp.lt.s32.totalorder %v868, 384
      %vm871 = vmand %vm869, %vm870
      %872 = vst.msk [vmem:[%s318] sm:$0x7] %vm871, %v866
      %p873 = scmp.lt.s32.totalorder %s22, 1
      %s874 = scalar_select %p873, %s22, 1
      %s875 = smul.addr %s874, 3
      %s876 = smul.addr %s875, 8
      %s877 = scalar_lea.vmem %s7, %s876
      %p878 = scmp.lt.s32.totalorder %s22, 1
      %s879 = scalar_select %p878, %s22, 1
      %s880 = smul.addr %s879, 3
      %s881 = scalar_lea.vmem %s8, %s880
      // Predicated region
      $region49: #{featlayer_last_forward.1} parent=47 // pred_check
        %p882 = pneg %p192
      $region50: #{featlayer_last_forward.1} parent=47 // pred_check_branch
        %884 = sbr.rel (%p882) target = $region52
      $region51: #{featlayer_last_forward.1} parent=47 // pred_region
        _
      $region52: #{featlayer_last_forward.1} parent=47 // pred_fallthru
        _
      // Predicated region
      $region53: #{featlayer_last_forward.1} parent=47 // pred_check
        %p885 = pneg %p218
      $region54: #{featlayer_last_forward.1} parent=47 // pred_check_branch
        %887 = sbr.rel (%p885) target = $region56
      $region55: #{featlayer_last_forward.1} parent=47 // pred_region
        _
      $region56: #{featlayer_last_forward.1} parent=47 // pred_fallthru
        _
    $region48: #{featlayer_last_forward.1} parent=5 // pred_fallthru
      _
    %p888 = scmp.le.s32.totalorder 2, %s17
    // Predicated region
    $region57: #{featlayer_last_forward.1} parent=5 // pred_check
      %p889 = pneg %p888
    $region58: #{featlayer_last_forward.1} parent=5 // pred_check_branch
      %891 = sbr.rel (%p889) target = $region60
    $region59: #{featlayer_last_forward.1} parent=5 // pred_region
      %s892 = ssub.s32 %s17, 2
      // Predicated region
      $region61: #{featlayer_last_forward.1} parent=59 // pred_check
        %p893 = pneg %p198
      $region62: #{featlayer_last_forward.1} parent=59 // pred_check_branch
        %895 = sbr.rel (%p893) target = $region64
      $region63: #{featlayer_last_forward.1} parent=59 // pred_region
        %p896 = scmp.lt.s32.totalorder %s23, 1
        %s897 = scalar_select %p896, %s23, 1
        %s898 = smul.addr %s897, 3
        %s899 = smul.addr %s898, 8
        %s900 = scalar_lea.vmem %s7, %s899
      $region64: #{featlayer_last_forward.1} parent=59 // pred_fallthru
        _
      // Predicated region
      $region65: #{featlayer_last_forward.1} parent=59 // pred_check
        %p901 = pneg %p224
      $region66: #{featlayer_last_forward.1} parent=59 // pred_check_branch
        %903 = sbr.rel (%p901) target = $region68
      $region67: #{featlayer_last_forward.1} parent=59 // pred_region
        %p904 = scmp.lt.s32.totalorder %s23, 1
        %s905 = scalar_select %p904, %s23, 1
        %s906 = smul.addr %s905, 3
        %s907 = scalar_lea.vmem %s8, %s906
      $region68: #{featlayer_last_forward.1} parent=59 // pred_fallthru
        _
    $region60: #{featlayer_last_forward.1} parent=5 // pred_fallthru
      _
  $region6: #{featlayer_last_forward.1} parent=0 // loop_footer
    %s21 = sadd.s32 1, %s17
  $region7: #{featlayer_last_forward.1} parent=0 // loop_footer_branch
    %16 = sbr.rel target = $region3
  $region8: #{featlayer_last_forward.1} parent=0 // loop_exit
    _

</llo_original>
